<compile_context>
chip_gen: v7x
topology: tpu7x:2x2x1
jax: 0.10.0
libtpu: 0.0.40
codegen_flags: <defaults>
</compile_context>

<pallas_src>
import jax
import jax.numpy as jnp
from jax.experimental import pallas as pl
from jax.experimental.pallas import tpu as pltpu


# ----------------------------- kernel ---------------------------------------


def _basic_block_kernel(x_ref, w1_ref, b1_ref, w2_ref, b2_ref, o_ref):
    """Fused relu(bn2(conv2(relu(bn1(conv1(x))))) + x) for one packed tile.

    x_ref : (1, H, L)     L = P*W*Cin, lane-dense merged layout
    wK_ref: (3, L, Lo)    block-diagonal banded weights (BN scale pre-folded)
    bK_ref: (1, Lo)       folded-BN bias, tiled across P*W
    o_ref : (1, H, Lo)
    """
    x = x_ref[0]                                   # (H, L), resident tile
    zrow = jnp.zeros((1, x.shape[1]), jnp.float32)

    def conv3x3(src, w_ref):
        # Vertical halos built in-register: band0[r] = src[r-1] (zero at r=0),
        # band2[r] = src[r+1] (zero at r=H-1).  W halos are inside the banded
        # weights, so each conv is just 3 fat (H, L) x (L, Lo) matmuls.
        band0 = jnp.concatenate([zrow, src[:-1, :]], axis=0)
        band2 = jnp.concatenate([src[1:, :], zrow], axis=0)
        acc = jnp.dot(band0, w_ref[0], preferred_element_type=jnp.float32)
        acc = acc + jnp.dot(src, w_ref[1], preferred_element_type=jnp.float32)
        acc = acc + jnp.dot(band2, w_ref[2], preferred_element_type=jnp.float32)
        return acc

    # conv1 -> BN1 (scale folded into w1) -> ReLU; stays in VMEM/registers.
    h = jnp.maximum(conv3x3(x, w1_ref) + b1_ref[...], 0.0)

    # conv2 -> BN2 -> +identity (reuse resident x) -> ReLU
    y = conv3x3(h, w2_ref) + b2_ref[...] + x
    o_ref[0] = jnp.maximum(y, 0.0).astype(o_ref.dtype)


# ----------------------------- packing / wrapper -----------------------------


def _fold_bn(gamma, beta, mean, var, eps=1e-5):
    scale = gamma * jax.lax.rsqrt(var + eps)
    return scale, beta - mean * scale


def _banded_conv_weights(w_oihw, width, pack=1):
    """(Cout, Cin, 3, 3) OIHW -> (3, P*W*Cin, P*W*Cout) block-diag banded mats.

    Within one image block: M[ky, xin*Cin + c, xout*Cout + o] =
    w[o, c, ky, xin - xout + 1] when |xin - xout| <= 1, else 0 (encodes the
    zero padding along W).  Blocks are diagonal over the P packed images.
    """
    cout, cin, kh, _ = w_oihw.shape
    wt = jnp.transpose(w_oihw, (2, 3, 1, 0))              # (ky, kx, Cin, Cout)
    xin = jnp.arange(width)[:, None]
    xout = jnp.arange(width)[None, :]
    dx = xin - xout + 1                                   # (W, W)
    valid = ((dx >= 0) & (dx <= 2)).astype(w_oihw.dtype)[..., None, None]
    dx_c = jnp.clip(dx, 0, 2)
    mats = []
    for ky in range(kh):
        m = wt[ky][dx_c] * valid                          # (W, W, Cin, Cout)
        m = jnp.transpose(m, (0, 2, 1, 3))                # [xin, c, xout, o]
        mats.append(m.reshape(width * cin, width * cout))
    base = jnp.stack(mats, axis=0)                        # (3, W*Cin, W*Cout)
    if pack > 1:
        eye = jnp.eye(pack, dtype=base.dtype)
        base = jnp.einsum("pq,kij->kpiqj", eye, base).reshape(
            kh, pack * width * cin, pack * width * cout)
    return base


def pack_block_params(params, width, pack=1):
    """One-time repack: fold BN scale into weights, build banded matrices."""
    cout = params["w1"].shape[0]
    w1 = params["w1"] * params["s1"][:, None, None, None]   # BN1 scale folded
    w2 = params["w2"] * params["s2"][:, None, None, None]   # BN2 scale folded
    lo = pack * width * cout
    return {
        "w1": _banded_conv_weights(w1, width, pack),
        "w2": _banded_conv_weights(w2, width, pack),
        "b1": jnp.tile(params["b1"], pack * width).reshape(1, lo),
        "b2": jnp.tile(params["b2"], pack * width).reshape(1, lo),
    }


def _choose_pack(n, width, cin, target_lanes=128):
    """Pack P images per tile so the lane width approaches 128."""
    p = max(1, target_lanes // (width * cin))
    while p > 1 and n % p != 0:
        p -= 1
    return p


def basic_block_forward(x_nchw, packed):
    """BasicBlock.forward (stride=1, no downsample, no CBAM); NCHW in/out."""
    n, cin, h, w = x_nchw.shape
    lc = packed["w1"].shape[1]          # P * W * Cin
    lo = packed["w1"].shape[2]          # P * W * Cout
    pack = lc // (w * cin)
    assert lc == pack * w * cin, "packed weights must match input width/chans"
    cout = lo // (pack * w)
    assert cin == cout, "identity residual requires inplanes == planes"
    assert n % pack == 0, "batch must be divisible by the lane-pack factor"
    g = n // pack

    # NCHW -> lane-dense merged (G, H, P*W*C); pure layout ops, fold under jit.
    x2 = jnp.transpose(x_nchw, (0, 2, 3, 1))              # (N, H, W, C)
    x2 = x2.reshape(g, pack, h, w, cin)
    x2 = jnp.transpose(x2, (0, 2, 1, 3, 4)).reshape(g, h, lc)

    out2 = pl.pallas_call(
        _basic_block_kernel,
        out_shape=jax.ShapeDtypeStruct((g, h, lo), jnp.float32),
        grid=(g,),
        in_specs=[
            pl.BlockSpec((1, h, lc), lambda b: (b, 0, 0)),     # x (per tile)
            pl.BlockSpec((3, lc, lo), lambda b: (0, 0, 0)),    # w1 banded
            pl.BlockSpec((1, lo), lambda b: (0, 0)),           # b1
            pl.BlockSpec((3, lo, lo), lambda b: (0, 0, 0)),    # w2 banded
            pl.BlockSpec((1, lo), lambda b: (0, 0)),           # b2
        ],
        out_specs=pl.BlockSpec((1, h, lo), lambda b: (b, 0, 0)),
        compiler_params=pltpu.CompilerParams(
            dimension_semantics=("parallel",),
            vmem_limit_bytes=32 * 1024 * 1024,
        ),
    )(x2, packed["w1"], packed["b1"], packed["w2"], packed["b2"])

    # merged -> NCHW
    out = out2.reshape(g, h, pack, w, cout)
    out = jnp.transpose(out, (0, 2, 1, 3, 4)).reshape(n, h, w, cout)
    return jnp.transpose(out, (0, 3, 1, 2))


# ----------------------------- reference & params ----------------------------


def _ref_forward(x, params):
    def conv(xx, w):
        return jax.lax.conv_general_dilated(
            xx, w, window_strides=(1, 1), padding=((1, 1), (1, 1)),
            dimension_numbers=("NCHW", "OIHW", "NCHW"))

    s1 = params["s1"].reshape(1, -1, 1, 1)
    b1 = params["b1"].reshape(1, -1, 1, 1)
    s2 = params["s2"].reshape(1, -1, 1, 1)
    b2 = params["b2"].reshape(1, -1, 1, 1)
    h = jnp.maximum(conv(x, params["w1"]) * s1 + b1, 0.0)
    o = conv(h, params["w2"]) * s2 + b2 + x
    return jnp.maximum(o, 0.0)


def _make_params(key, inplanes, planes):
    ks = jax.random.split(key, 10)
    w1 = 0.2 * jax.random.normal(ks[0], (planes, inplanes, 3, 3), jnp.float32)
    w2 = 0.2 * jax.random.normal(ks[1], (planes, planes, 3, 3), jnp.float32)
    g1 = 1.0 + 0.1 * jax.random.normal(ks[2], (planes,), jnp.float32)
    be1 = 0.1 * jax.random.normal(ks[3], (planes,), jnp.float32)
    m1 = 0.1 * jax.random.normal(ks[4], (planes,), jnp.float32)
    v1 = jax.random.uniform(ks[5], (planes,), jnp.float32, 0.5, 1.5)
    g2 = 1.0 + 0.1 * jax.random.normal(ks[6], (planes,), jnp.float32)
    be2 = 0.1 * jax.random.normal(ks[7], (planes,), jnp.float32)
    m2 = 0.1 * jax.random.normal(ks[8], (planes,), jnp.float32)
    v2 = jax.random.uniform(ks[9], (planes,), jnp.float32, 0.5, 1.5)
    s1, b1 = _fold_bn(g1, be1, m1, v1)
    s2, b2 = _fold_bn(g2, be2, m2, v2)
    return {"w1": w1, "s1": s1, "b1": b1, "w2": w2, "s2": s2, "b2": b2}


# ----------------------------- main ------------------------------------------

if __name__ == "__main__":
    key = jax.random.PRNGKey(0)
    k_x, k_p = jax.random.split(key)

    N, C, H, W = 2, 4, 16, 16        # inplanes == planes, stride 1
    x = jax.random.normal(k_x, (N, C, H, W), jnp.float32)
    params = _make_params(k_p, C, C)

    pack = _choose_pack(N, W, C)                 # -> 2: (H, 128) lane-dense
    packed = pack_block_params(params, W, pack)  # one-time repack, off hot path
    fwd = jax.jit(basic_block_forward)

    out = jax.block_until_ready(fwd(x, packed))
    ref = jax.block_until_ready(_ref_forward(x, params))

    assert out.shape == (N, C, H, W)
    max_err = float(jnp.max(jnp.abs(out - ref)))
    assert jnp.allclose(out, ref, rtol=1e-4, atol=1e-4), max_err

    print("KERNEL_OK")
</pallas_src>

<mosaic_0001>
module attributes {stable_mosaic.version = 11 : i64} {
  func.func @_basic_block_kernel(%arg0: i32, %arg1: memref<1x16x128xf32, #tpu.memory_space<vmem>>, %arg2: memref<3x128x128xf32, #tpu.memory_space<vmem>>, %arg3: memref<1x128xf32, #tpu.memory_space<vmem>>, %arg4: memref<3x128x128xf32, #tpu.memory_space<vmem>>, %arg5: memref<1x128xf32, #tpu.memory_space<vmem>>, %arg6: memref<1x16x128xf32, #tpu.memory_space<vmem>>) attributes {dimension_semantics = [#tpu.dimension_semantics<parallel>], iteration_bounds = array<i64: 1>, scalar_prefetch = 0 : i64, scratch_operands = 0 : i64, tpu.core_type = #tpu.core_type<tc>, window_params = [{transform_indices = @transform_0, window_bounds = array<i64: 1, 16, 128>}, {pipeline_mode = #tpu.pipeline_mode<synchronous>, transform_indices = @transform_1, window_bounds = array<i64: 3, 128, 128>}, {pipeline_mode = #tpu.pipeline_mode<synchronous>, transform_indices = @transform_2, window_bounds = array<i64: 1, 128>}, {pipeline_mode = #tpu.pipeline_mode<synchronous>, transform_indices = @transform_3, window_bounds = array<i64: 3, 128, 128>}, {pipeline_mode = #tpu.pipeline_mode<synchronous>, transform_indices = @transform_4, window_bounds = array<i64: 1, 128>}, {transform_indices = @transform_5, window_bounds = array<i64: 1, 16, 128>}]} {
    %c0 = arith.constant 0 : index
    %c0_0 = arith.constant 0 : index
    %c0_1 = arith.constant 0 : index
    %0 = vector.load %arg1[%c0, %c0_0, %c0_1] : memref<1x16x128xf32, #tpu.memory_space<vmem>>, vector<1x16x128xf32>
    %1 = vector.shape_cast %0 : vector<1x16x128xf32> to vector<16x128xf32>
    %cst = arith.constant 0.000000e+00 : f32
    %2 = vector.broadcast %cst : f32 to vector<1x128xf32>
    %3 = vector.extract_strided_slice %1 {offsets = [0, 0], sizes = [15, 128], strides = [1, 1]} : vector<16x128xf32> to vector<15x128xf32>
    %4 = tpu.concatenate %2, %3 in 0 : vector<1x128xf32>, vector<15x128xf32> -> vector<16x128xf32>
    %5 = vector.extract_strided_slice %1 {offsets = [1, 0], sizes = [15, 128], strides = [1, 1]} : vector<16x128xf32> to vector<15x128xf32>
    %6 = tpu.concatenate %5, %2 in 0 : vector<15x128xf32>, vector<1x128xf32> -> vector<16x128xf32>
    %c0_2 = arith.constant 0 : index
    %c0_3 = arith.constant 0 : index
    %c0_4 = arith.constant 0 : index
    %7 = vector.load %arg2[%c0_2, %c0_3, %c0_4] : memref<3x128x128xf32, #tpu.memory_space<vmem>>, vector<1x128x128xf32>
    %8 = vector.shape_cast %7 : vector<1x128x128xf32> to vector<128x128xf32>
    %cst_5 = arith.constant dense<0.000000e+00> : vector<16x128xf32>
    %9 = tpu.matmul %4, %8, %cst_5 {dimension_numbers = #tpu.dot_dimension_numbers<[1], [0], [0], [1], [0, 0, 1, 1], [], []>} : vector<16x128xf32>, vector<128x128xf32>, vector<16x128xf32> -> vector<16x128xf32>
    %c1 = arith.constant 1 : index
    %c0_6 = arith.constant 0 : index
    %c0_7 = arith.constant 0 : index
    %10 = vector.load %arg2[%c1, %c0_6, %c0_7] : memref<3x128x128xf32, #tpu.memory_space<vmem>>, vector<1x128x128xf32>
    %11 = vector.shape_cast %10 : vector<1x128x128xf32> to vector<128x128xf32>
    %cst_8 = arith.constant dense<0.000000e+00> : vector<16x128xf32>
    %12 = tpu.matmul %1, %11, %cst_8 {dimension_numbers = #tpu.dot_dimension_numbers<[1], [0], [0], [1], [0, 0, 1, 1], [], []>} : vector<16x128xf32>, vector<128x128xf32>, vector<16x128xf32> -> vector<16x128xf32>
    %13 = arith.addf %9, %12 : vector<16x128xf32>
    %c2 = arith.constant 2 : index
    %c0_9 = arith.constant 0 : index
    %c0_10 = arith.constant 0 : index
    %14 = vector.load %arg2[%c2, %c0_9, %c0_10] : memref<3x128x128xf32, #tpu.memory_space<vmem>>, vector<1x128x128xf32>
    %15 = vector.shape_cast %14 : vector<1x128x128xf32> to vector<128x128xf32>
    %cst_11 = arith.constant dense<0.000000e+00> : vector<16x128xf32>
    %16 = tpu.matmul %6, %15, %cst_11 {dimension_numbers = #tpu.dot_dimension_numbers<[1], [0], [0], [1], [0, 0, 1, 1], [], []>} : vector<16x128xf32>, vector<128x128xf32>, vector<16x128xf32> -> vector<16x128xf32>
    %17 = arith.addf %13, %16 : vector<16x128xf32>
    %c0_12 = arith.constant 0 : index
    %c0_13 = arith.constant 0 : index
    %18 = vector.load %arg3[%c0_12, %c0_13] : memref<1x128xf32, #tpu.memory_space<vmem>>, vector<1x128xf32>
    %19 = vector.broadcast %18 : vector<1x128xf32> to vector<16x128xf32>
    %20 = arith.addf %17, %19 : vector<16x128xf32>
    %cst_14 = arith.constant 0.000000e+00 : f32
    %21 = vector.broadcast %cst_14 : f32 to vector<16x128xf32>
    %22 = arith.maximumf %20, %21 : vector<16x128xf32>
    %23 = vector.extract_strided_slice %22 {offsets = [0, 0], sizes = [15, 128], strides = [1, 1]} : vector<16x128xf32> to vector<15x128xf32>
    %24 = tpu.concatenate %2, %23 in 0 : vector<1x128xf32>, vector<15x128xf32> -> vector<16x128xf32>
    %25 = vector.extract_strided_slice %22 {offsets = [1, 0], sizes = [15, 128], strides = [1, 1]} : vector<16x128xf32> to vector<15x128xf32>
    %26 = tpu.concatenate %25, %2 in 0 : vector<15x128xf32>, vector<1x128xf32> -> vector<16x128xf32>
    %c0_15 = arith.constant 0 : index
    %c0_16 = arith.constant 0 : index
    %c0_17 = arith.constant 0 : index
    %27 = vector.load %arg4[%c0_15, %c0_16, %c0_17] : memref<3x128x128xf32, #tpu.memory_space<vmem>>, vector<1x128x128xf32>
    %28 = vector.shape_cast %27 : vector<1x128x128xf32> to vector<128x128xf32>
    %cst_18 = arith.constant dense<0.000000e+00> : vector<16x128xf32>
    %29 = tpu.matmul %24, %28, %cst_18 {dimension_numbers = #tpu.dot_dimension_numbers<[1], [0], [0], [1], [0, 0, 1, 1], [], []>} : vector<16x128xf32>, vector<128x128xf32>, vector<16x128xf32> -> vector<16x128xf32>
    %c1_19 = arith.constant 1 : index
    %c0_20 = arith.constant 0 : index
    %c0_21 = arith.constant 0 : index
    %30 = vector.load %arg4[%c1_19, %c0_20, %c0_21] : memref<3x128x128xf32, #tpu.memory_space<vmem>>, vector<1x128x128xf32>
    %31 = vector.shape_cast %30 : vector<1x128x128xf32> to vector<128x128xf32>
    %cst_22 = arith.constant dense<0.000000e+00> : vector<16x128xf32>
    %32 = tpu.matmul %22, %31, %cst_22 {dimension_numbers = #tpu.dot_dimension_numbers<[1], [0], [0], [1], [0, 0, 1, 1], [], []>} : vector<16x128xf32>, vector<128x128xf32>, vector<16x128xf32> -> vector<16x128xf32>
    %33 = arith.addf %29, %32 : vector<16x128xf32>
    %c2_23 = arith.constant 2 : index
    %c0_24 = arith.constant 0 : index
    %c0_25 = arith.constant 0 : index
    %34 = vector.load %arg4[%c2_23, %c0_24, %c0_25] : memref<3x128x128xf32, #tpu.memory_space<vmem>>, vector<1x128x128xf32>
    %35 = vector.shape_cast %34 : vector<1x128x128xf32> to vector<128x128xf32>
    %cst_26 = arith.constant dense<0.000000e+00> : vector<16x128xf32>
    %36 = tpu.matmul %26, %35, %cst_26 {dimension_numbers = #tpu.dot_dimension_numbers<[1], [0], [0], [1], [0, 0, 1, 1], [], []>} : vector<16x128xf32>, vector<128x128xf32>, vector<16x128xf32> -> vector<16x128xf32>
    %37 = arith.addf %33, %36 : vector<16x128xf32>
    %c0_27 = arith.constant 0 : index
    %c0_28 = arith.constant 0 : index
    %38 = vector.load %arg5[%c0_27, %c0_28] : memref<1x128xf32, #tpu.memory_space<vmem>>, vector<1x128xf32>
    %39 = vector.broadcast %38 : vector<1x128xf32> to vector<16x128xf32>
    %40 = arith.addf %37, %39 : vector<16x128xf32>
    %41 = arith.addf %40, %1 : vector<16x128xf32>
    %cst_29 = arith.constant 0.000000e+00 : f32
    %42 = vector.broadcast %cst_29 : f32 to vector<16x128xf32>
    %43 = arith.maximumf %41, %42 : vector<16x128xf32>
    %c0_30 = arith.constant 0 : index
    %c0_31 = arith.constant 0 : index
    %c0_32 = arith.constant 0 : index
    %44 = vector.load %arg6[%c0_30, %c0_31, %c0_32] : memref<1x16x128xf32, #tpu.memory_space<vmem>>, vector<1x16x128xf32>
    %45 = vector.shape_cast %44 : vector<1x16x128xf32> to vector<16x128xf32>
    %46 = vector.shape_cast %43 : vector<16x128xf32> to vector<1x16x128xf32>
    tpu.vector_store %arg6[%c0_30, %c0_31, %c0_32], %46 {strides = array<i32>} : memref<1x16x128xf32, #tpu.memory_space<vmem>>, vector<1x16x128xf32>,
    return
  }
  func.func @transform_0(%arg0: i32) -> (i32, i32, i32) {
    %c0_i32 = arith.constant 0 : i32
    %c0_i32_0 = arith.constant 0 : i32
    %c0_i32_1 = arith.constant 0 : i32
    return %arg0, %c0_i32, %c0_i32_0 : i32, i32, i32
  }
  func.func @transform_1(%arg0: i32) -> (i32, i32, i32) {
    %c0_i32 = arith.constant 0 : i32
    %c0_i32_0 = arith.constant 0 : i32
    %c0_i32_1 = arith.constant 0 : i32
    %c0_i32_2 = arith.constant 0 : i32
    return %c0_i32, %c0_i32_0, %c0_i32_1 : i32, i32, i32
  }
  func.func @transform_2(%arg0: i32) -> (i32, i32) {
    %c0_i32 = arith.constant 0 : i32
    %c0_i32_0 = arith.constant 0 : i32
    %c0_i32_1 = arith.constant 0 : i32
    return %c0_i32, %c0_i32_0 : i32, i32
  }
  func.func @transform_3(%arg0: i32) -> (i32, i32, i32) {
    %c0_i32 = arith.constant 0 : i32
    %c0_i32_0 = arith.constant 0 : i32
    %c0_i32_1 = arith.constant 0 : i32
    %c0_i32_2 = arith.constant 0 : i32
    return %c0_i32, %c0_i32_0, %c0_i32_1 : i32, i32, i32
  }
  func.func @transform_4(%arg0: i32) -> (i32, i32) {
    %c0_i32 = arith.constant 0 : i32
    %c0_i32_0 = arith.constant 0 : i32
    %c0_i32_1 = arith.constant 0 : i32
    return %c0_i32, %c0_i32_0 : i32, i32
  }
  func.func @transform_5(%arg0: i32) -> (i32, i32, i32) {
    %c0_i32 = arith.constant 0 : i32
    %c0_i32_0 = arith.constant 0 : i32
    %c0_i32_1 = arith.constant 0 : i32
    return %arg0, %c0_i32, %c0_i32_0 : i32, i32, i32
  }
}

</mosaic_0001>

<llo_original>
// kernel: basic_block_forward.1
$region0: #{basic_block_forward.1}
  #allocation0 [shape = 'u32[]', space=smem, size = 0x4, offset = 0x4, fixed_abs, tag = 'smem constant byte address 0x4 - core index']
  #allocation1 [shape = 'u32[144,128]{1,0:T(1,128)}', space=vmem, size = 0x12000, scoped, tag = 'internal scratch']
  %s0 = inlined_call_operand.vmem [shape: f32[1,16,128], index: 0, kind: input, shape index: {}]
  %s1 = inlined_call_operand.vmem [shape: f32[3,128,128], index: 1, kind: input, shape index: {}]
  %s2 = inlined_call_operand.vmem [shape: f32[1,128], index: 2, kind: input, shape index: {}]
  %s3 = inlined_call_operand.hbm [shape: f32[3,128,128], index: 3, kind: input, shape index: {}]
  %s4 = inlined_call_operand.vmem [shape: f32[1,128], index: 4, kind: input, shape index: {}]
  %s5 = inlined_call_operand.vmem [shape: f32[1,16,128], index: 5, kind: output, shape index: {}]
  %s6 = sld [smem:[#allocation0]]
  $region34: #{basic_block_forward.1} parent=0
    _
  %s8 = ssub.s32 1, %s6
  %s9 = scalar_select 0, %s8, %s6
  $region1: #{basic_block_forward.1} parent=0
    #allocation2 [shape = 'u8[196608]{0}', space=vmem, size = 0x30000, scoped, tag = 'input window, operand 3, single buffered']
    #allocation3 [shape = 's32[1]{0}', space=sflag, size = 0x4, scoped, tag = 'scoped memory for basic_block_forward.1']
    %10 = vsyncpa [#allocation3], 0
    // Predicated region
    $region2: #{basic_block_forward.1} parent=1 // pred_check
      _
    $region3: #{basic_block_forward.1} parent=1 // pred_check_branch
      %12 = sbr.rel (0) target = $region5
    $region4: #{basic_block_forward.1} parent=1 // pred_region
      _
    $region5: #{basic_block_forward.1} parent=1 // pred_fallthru
      _
    // Predicated region
    $region6: #{basic_block_forward.1} parent=1 // pred_check
      _
    $region7: #{basic_block_forward.1} parent=1 // pred_check_branch
      %14 = sbr.rel (0) target = $region9
    $region8: #{basic_block_forward.1} parent=1 // pred_region
      _
    $region9: #{basic_block_forward.1} parent=1 // pred_fallthru
      _
    // Predicated region
    $region10: #{basic_block_forward.1} parent=1 // pred_check
      _
    $region11: #{basic_block_forward.1} parent=1 // pred_check_branch
      %16 = sbr.rel (0) target = $region13
    $region12: #{basic_block_forward.1} parent=1 // pred_region
      _
    $region13: #{basic_block_forward.1} parent=1 // pred_fallthru
      _
    // Predicated region
    $region14: #{basic_block_forward.1} parent=1 // pred_check
      _
    $region15: #{basic_block_forward.1} parent=1 // pred_check_branch
      %18 = sbr.rel (0) target = $region17
    $region16: #{basic_block_forward.1} parent=1 // pred_region
      %s20 = ssub.s32 6144, 6144
      %21 = vsyncadd [#allocation3], %s20
      %s22 = sshll.u32 [#allocation2], 4
      %s23 = int_to_ptr.vmem [resolvable:$true] %s22
      %28 = dma.hbm_to_vmem [thread:$0]  %s3, 6144, %s23, [#allocation3], 128, 128, 8
    $region17: #{basic_block_forward.1} parent=1 // pred_fallthru
      _
    // Predicated region
    $region18: #{basic_block_forward.1} parent=1 // pred_check
      _
    $region19: #{basic_block_forward.1} parent=1 // pred_check_branch
      %30 = sbr.rel (0) target = $region21
    $region20: #{basic_block_forward.1} parent=1 // pred_region
      _
    $region21: #{basic_block_forward.1} parent=1 // pred_fallthru
      _
    // Predicated region
    $region22: #{basic_block_forward.1} parent=1 // pred_check
      _
    $region23: #{basic_block_forward.1} parent=1 // pred_check_branch
      %32 = sbr.rel (0) target = $region25
    $region24: #{basic_block_forward.1} parent=1 // pred_region
      %33 = dma.done [#allocation3], 6144
    $region25: #{basic_block_forward.1} parent=1 // pred_fallthru
      _
    %v34 = vld [vmem:[%s0] sm:$0xff]
    %v35 = vld [vmem:[%s0 + $0x8] sm:$0xff]
    %vm38 = vcmask 1040384
    %v39 = vrot.slane %v34, 7
    %v40 = vrot.slane %v35, 7
    %v41 = vsel %vm38, %v39, %v40
    %v44 = vsel %vm38, 0.0, %v39
    %vm45 = vcmask 1046528
    %v46 = vrot.slane %v34, 1
    %v47 = vrot.slane %v35, 1
    %v48 = vsel %vm45, %v46, %v47
    %v51 = vsel %vm45, %v47, 0.0
    %v52 = vld [vmem:[%s1] sm:$0xff]
    %v53 = vld [vmem:[%s1 + $0x8] sm:$0xff]
    %v54 = vld [vmem:[%s1 + $0x10] sm:$0xff]
    %v55 = vld [vmem:[%s1 + $0x18] sm:$0xff]
    %v56 = vld [vmem:[%s1 + $0x20] sm:$0xff]
    %v57 = vld [vmem:[%s1 + $0x28] sm:$0xff]
    %v58 = vld [vmem:[%s1 + $0x30] sm:$0xff]
    %v59 = vld [vmem:[%s1 + $0x38] sm:$0xff]
    %v60 = vld [vmem:[%s1 + $0x40] sm:$0xff]
    %v61 = vld [vmem:[%s1 + $0x48] sm:$0xff]
    %v62 = vld [vmem:[%s1 + $0x50] sm:$0xff]
    %v63 = vld [vmem:[%s1 + $0x58] sm:$0xff]
    %v64 = vld [vmem:[%s1 + $0x60] sm:$0xff]
    %v65 = vld [vmem:[%s1 + $0x68] sm:$0xff]
    %v66 = vld [vmem:[%s1 + $0x70] sm:$0xff]
    %v67 = vld [vmem:[%s1 + $0x78] sm:$0xff]
    %s68 = scalar_lea.vmem %s1, 128
    %v69 = vld [vmem:[%s68] sm:$0xff]
    %v70 = vld [vmem:[%s68 + $0x8] sm:$0xff]
    %v71 = vld [vmem:[%s68 + $0x10] sm:$0xff]
    %v72 = vld [vmem:[%s68 + $0x18] sm:$0xff]
    %v73 = vld [vmem:[%s68 + $0x20] sm:$0xff]
    %v74 = vld [vmem:[%s68 + $0x28] sm:$0xff]
    %v75 = vld [vmem:[%s68 + $0x30] sm:$0xff]
    %v76 = vld [vmem:[%s68 + $0x38] sm:$0xff]
    %v77 = vld [vmem:[%s68 + $0x40] sm:$0xff]
    %v78 = vld [vmem:[%s68 + $0x48] sm:$0xff]
    %v79 = vld [vmem:[%s68 + $0x50] sm:$0xff]
    %v80 = vld [vmem:[%s68 + $0x58] sm:$0xff]
    %v81 = vld [vmem:[%s68 + $0x60] sm:$0xff]
    %v82 = vld [vmem:[%s68 + $0x68] sm:$0xff]
    %v83 = vld [vmem:[%s68 + $0x70] sm:$0xff]
    %v84 = vld [vmem:[%s68 + $0x78] sm:$0xff]
    %85 = vmatprep.subr.mxu0 0.0
    %86 = vmatpush1.msra.mxu0 %v69
    %87 = vmatprep.subr.mxu0 0.0
    %88 = vmatpush1.msra.mxu0 %v70
    %89 = vmatprep.subr.mxu0 0.0
    %90 = vmatpush1.msra.mxu0 %v71
    %91 = vmatprep.subr.mxu0 0.0
    %92 = vmatpush1.msra.mxu0 %v72
    %93 = vmatprep.subr.mxu0 0.0
    %94 = vmatpush1.msra.mxu0 %v73
    %95 = vmatprep.subr.mxu0 0.0
    %96 = vmatpush1.msra.mxu0 %v74
    %97 = vmatprep.subr.mxu0 0.0
    %98 = vmatpush1.msra.mxu0 %v75
    %99 = vmatprep.subr.mxu0 0.0
    %100 = vmatpush1.msra.mxu0 %v76
    %101 = vmatprep.subr.mxu0 0.0
    %102 = vmatpush1.msra.mxu0 %v77
    %103 = vmatprep.subr.mxu0 0.0
    %104 = vmatpush1.msra.mxu0 %v78
    %105 = vmatprep.subr.mxu0 0.0
    %106 = vmatpush1.msra.mxu0 %v79
    %107 = vmatprep.subr.mxu0 0.0
    %108 = vmatpush1.msra.mxu0 %v80
    %109 = vmatprep.subr.mxu0 0.0
    %110 = vmatpush1.msra.mxu0 %v81
    %111 = vmatprep.subr.mxu0 0.0
    %112 = vmatpush1.msra.mxu0 %v82
    %113 = vmatprep.subr.mxu0 0.0
    %114 = vmatpush1.msra.mxu0 %v83
    %115 = vmatprep.subr.mxu0 0.0
    %116 = vmatpush1.msra.mxu0 %v84
    %117 = vmatprep.subr.mxu0 0.0
    %118 = vmatpush1.msra.mxu0 0.0
    %119 = vmatprep.subr.mxu0 0.0
    %120 = vmatpush1.msra.mxu0 0.0
    %121 = vmatprep.subr.mxu0 0.0
    %122 = vmatpush1.msra.mxu0 0.0
    %123 = vmatprep.subr.mxu0 0.0
    %124 = vmatpush1.msra.mxu0 0.0
    %125 = vmatprep.subr.mxu0 0.0
    %126 = vmatpush1.msra.mxu0 0.0
    %127 = vmatprep.subr.mxu0 0.0
    %128 = vmatpush1.msra.mxu0 0.0
    %129 = vmatprep.subr.mxu0 0.0
    %130 = vmatpush1.msra.mxu0 0.0
    %131 = vmatprep.subr.mxu0 0.0
    %132 = vmatpush1.msra.mxu0 0.0
    %133 = vmatprep.subr.mxu0 0.0
    %134 = vmatpush1.msra.mxu0 0.0
    %135 = vmatprep.subr.mxu0 0.0
    %136 = vmatpush1.msra.mxu0 0.0
    %137 = vmatprep.subr.mxu0 0.0
    %138 = vmatpush1.msra.mxu0 0.0
    %139 = vmatprep.subr.mxu0 0.0
    %140 = vmatpush1.msra.mxu0 0.0
    %141 = vmatprep.subr.mxu0 0.0
    %142 = vmatpush1.msra.mxu0 0.0
    %143 = vmatprep.subr.mxu0 0.0
    %144 = vmatpush1.msra.mxu0 0.0
    %145 = vmatprep.subr.mxu0 0.0
    %146 = vmatpush1.msra.mxu0 0.0
    %147 = vmatprep.subr.mxu0 0.0
    %148 = vmatpush1.msra.mxu0 0.0
    %149 = vmatprep.mubr.f32.mxu0 0.0
    %150 = vmatmul.mubr.f32.gmra.mrb[0].mxu0 %v34
    %v151 = vpop.f32.mrb[0].mxu0
    %v152 = vadd.f32 0.0, %v151
    %v153 = vpop.f32.mrb[0].mxu0
    %154 = vmatprep.mubr.f32.mxu0 0.0
    %155 = vmatmul.mubr.f32.gmra.mrb[0].mxu0 %v35
    %v156 = vpop.f32.mrb[0].mxu0
    %v157 = vadd.f32 0.0, %v156
    %v158 = vpop.f32.mrb[0].mxu0
    %159 = vdwg.mxu0
    %160 = vmatprep.subr.mxu0 0.0
    %161 = vmatpush1.msra.mxu0 %v52
    %162 = vmatprep.subr.mxu0 0.0
    %163 = vmatpush1.msra.mxu0 %v53
    %164 = vmatprep.subr.mxu0 0.0
    %165 = vmatpush1.msra.mxu0 %v54
    %166 = vmatprep.subr.mxu0 0.0
    %167 = vmatpush1.msra.mxu0 %v55
    %168 = vmatprep.subr.mxu0 0.0
    %169 = vmatpush1.msra.mxu0 %v56
    %170 = vmatprep.subr.mxu0 0.0
    %171 = vmatpush1.msra.mxu0 %v57
    %172 = vmatprep.subr.mxu0 0.0
    %173 = vmatpush1.msra.mxu0 %v58
    %174 = vmatprep.subr.mxu0 0.0
    %175 = vmatpush1.msra.mxu0 %v59
    %176 = vmatprep.subr.mxu0 0.0
    %177 = vmatpush1.msra.mxu0 %v60
    %178 = vmatprep.subr.mxu0 0.0
    %179 = vmatpush1.msra.mxu0 %v61
    %180 = vmatprep.subr.mxu0 0.0
    %181 = vmatpush1.msra.mxu0 %v62
    %182 = vmatprep.subr.mxu0 0.0
    %183 = vmatpush1.msra.mxu0 %v63
    %184 = vmatprep.subr.mxu0 0.0
    %185 = vmatpush1.msra.mxu0 %v64
    %186 = vmatprep.subr.mxu0 0.0
    %187 = vmatpush1.msra.mxu0 %v65
    %188 = vmatprep.subr.mxu0 0.0
    %189 = vmatpush1.msra.mxu0 %v66
    %190 = vmatprep.subr.mxu0 0.0
    %191 = vmatpush1.msra.mxu0 %v67
    %192 = vmatprep.subr.mxu0 0.0
    %193 = vmatpush1.msra.mxu0 0.0
    %194 = vmatprep.subr.mxu0 0.0
    %195 = vmatpush1.msra.mxu0 0.0
    %196 = vmatprep.subr.mxu0 0.0
    %197 = vmatpush1.msra.mxu0 0.0
    %198 = vmatprep.subr.mxu0 0.0
    %199 = vmatpush1.msra.mxu0 0.0
    %200 = vmatprep.subr.mxu0 0.0
    %201 = vmatpush1.msra.mxu0 0.0
    %202 = vmatprep.subr.mxu0 0.0
    %203 = vmatpush1.msra.mxu0 0.0
    %204 = vmatprep.subr.mxu0 0.0
    %205 = vmatpush1.msra.mxu0 0.0
    %206 = vmatprep.subr.mxu0 0.0
    %207 = vmatpush1.msra.mxu0 0.0
    %208 = vmatprep.subr.mxu0 0.0
    %209 = vmatpush1.msra.mxu0 0.0
    %210 = vmatprep.subr.mxu0 0.0
    %211 = vmatpush1.msra.mxu0 0.0
    %212 = vmatprep.subr.mxu0 0.0
    %213 = vmatpush1.msra.mxu0 0.0
    %214 = vmatprep.subr.mxu0 0.0
    %215 = vmatpush1.msra.mxu0 0.0
    %216 = vmatprep.subr.mxu0 0.0
    %217 = vmatpush1.msra.mxu0 0.0
    %218 = vmatprep.subr.mxu0 0.0
    %219 = vmatpush1.msra.mxu0 0.0
    %220 = vmatprep.subr.mxu0 0.0
    %221 = vmatpush1.msra.mxu0 0.0
    %222 = vmatprep.subr.mxu0 0.0
    %223 = vmatpush1.msra.mxu0 0.0
    %224 = vmatprep.mubr.f32.mxu0 0.0
    %225 = vmatmul.mubr.f32.gmra.mrb[0].mxu0 %v44
    %v226 = vpop.f32.mrb[0].mxu0
    %v227 = vadd.f32 %v152, %v226
    %v228 = vpop.f32.mrb[0].mxu0
    %229 = vmatprep.mubr.f32.mxu0 0.0
    %230 = vmatmul.mubr.f32.gmra.mrb[0].mxu0 %v41
    %v231 = vpop.f32.mrb[0].mxu0
    %v232 = vadd.f32 %v157, %v231
    %v233 = vpop.f32.mrb[0].mxu0
    %234 = vdwg.mxu0
    %s235 = scalar_lea.vmem %s1, 256
    %v236 = vld [vmem:[%s235] sm:$0xff]
    %v237 = vld [vmem:[%s235 + $0x8] sm:$0xff]
    %v238 = vld [vmem:[%s235 + $0x10] sm:$0xff]
    %v239 = vld [vmem:[%s235 + $0x18] sm:$0xff]
    %v240 = vld [vmem:[%s235 + $0x20] sm:$0xff]
    %v241 = vld [vmem:[%s235 + $0x28] sm:$0xff]
    %v242 = vld [vmem:[%s235 + $0x30] sm:$0xff]
    %v243 = vld [vmem:[%s235 + $0x38] sm:$0xff]
    %v244 = vld [vmem:[%s235 + $0x40] sm:$0xff]
    %v245 = vld [vmem:[%s235 + $0x48] sm:$0xff]
    %v246 = vld [vmem:[%s235 + $0x50] sm:$0xff]
    %v247 = vld [vmem:[%s235 + $0x58] sm:$0xff]
    %v248 = vld [vmem:[%s235 + $0x60] sm:$0xff]
    %v249 = vld [vmem:[%s235 + $0x68] sm:$0xff]
    %v250 = vld [vmem:[%s235 + $0x70] sm:$0xff]
    %v251 = vld [vmem:[%s235 + $0x78] sm:$0xff]
    %252 = vmatprep.subr.mxu0 0.0
    %253 = vmatpush1.msra.mxu0 %v236
    %254 = vmatprep.subr.mxu0 0.0
    %255 = vmatpush1.msra.mxu0 %v237
    %256 = vmatprep.subr.mxu0 0.0
    %257 = vmatpush1.msra.mxu0 %v238
    %258 = vmatprep.subr.mxu0 0.0
    %259 = vmatpush1.msra.mxu0 %v239
    %260 = vmatprep.subr.mxu0 0.0
    %261 = vmatpush1.msra.mxu0 %v240
    %262 = vmatprep.subr.mxu0 0.0
    %263 = vmatpush1.msra.mxu0 %v241
    %264 = vmatprep.subr.mxu0 0.0
    %265 = vmatpush1.msra.mxu0 %v242
    %266 = vmatprep.subr.mxu0 0.0
    %267 = vmatpush1.msra.mxu0 %v243
    %268 = vmatprep.subr.mxu0 0.0
    %269 = vmatpush1.msra.mxu0 %v244
    %270 = vmatprep.subr.mxu0 0.0
    %271 = vmatpush1.msra.mxu0 %v245
    %272 = vmatprep.subr.mxu0 0.0
    %273 = vmatpush1.msra.mxu0 %v246
    %274 = vmatprep.subr.mxu0 0.0
    %275 = vmatpush1.msra.mxu0 %v247
    %276 = vmatprep.subr.mxu0 0.0
    %277 = vmatpush1.msra.mxu0 %v248
    %278 = vmatprep.subr.mxu0 0.0
    %279 = vmatpush1.msra.mxu0 %v249
    %280 = vmatprep.subr.mxu0 0.0
    %281 = vmatpush1.msra.mxu0 %v250
    %282 = vmatprep.subr.mxu0 0.0
    %283 = vmatpush1.msra.mxu0 %v251
    %284 = vmatprep.subr.mxu0 0.0
    %285 = vmatpush1.msra.mxu0 0.0
    %286 = vmatprep.subr.mxu0 0.0
    %287 = vmatpush1.msra.mxu0 0.0
    %288 = vmatprep.subr.mxu0 0.0
    %289 = vmatpush1.msra.mxu0 0.0
    %290 = vmatprep.subr.mxu0 0.0
    %291 = vmatpush1.msra.mxu0 0.0
    %292 = vmatprep.subr.mxu0 0.0
    %293 = vmatpush1.msra.mxu0 0.0
    %294 = vmatprep.subr.mxu0 0.0
    %295 = vmatpush1.msra.mxu0 0.0
    %296 = vmatprep.subr.mxu0 0.0
    %297 = vmatpush1.msra.mxu0 0.0
    %298 = vmatprep.subr.mxu0 0.0
    %299 = vmatpush1.msra.mxu0 0.0
    %300 = vmatprep.subr.mxu0 0.0
    %301 = vmatpush1.msra.mxu0 0.0
    %302 = vmatprep.subr.mxu0 0.0
    %303 = vmatpush1.msra.mxu0 0.0
    %304 = vmatprep.subr.mxu0 0.0
    %305 = vmatpush1.msra.mxu0 0.0
    %306 = vmatprep.subr.mxu0 0.0
    %307 = vmatpush1.msra.mxu0 0.0
    %308 = vmatprep.subr.mxu0 0.0
    %309 = vmatpush1.msra.mxu0 0.0
    %310 = vmatprep.subr.mxu0 0.0
    %311 = vmatpush1.msra.mxu0 0.0
    %312 = vmatprep.subr.mxu0 0.0
    %313 = vmatpush1.msra.mxu0 0.0
    %314 = vmatprep.subr.mxu0 0.0
    %315 = vmatpush1.msra.mxu0 0.0
    %316 = vmatprep.mubr.f32.mxu0 0.0
    %317 = vmatmul.mubr.f32.gmra.mrb[0].mxu0 %v48
    %v318 = vpop.f32.mrb[0].mxu0
    %v319 = vadd.f32 0.0, %v318
    %v320 = vpop.f32.mrb[0].mxu0
    %321 = vmatprep.mubr.f32.mxu0 0.0
    %322 = vmatmul.mubr.f32.gmra.mrb[0].mxu0 %v51
    %v323 = vpop.f32.mrb[0].mxu0
    %v324 = vadd.f32 0.0, %v323
    %v325 = vpop.f32.mrb[0].mxu0
    %326 = vdwg.mxu0
    %v327 = vadd.f32 %v227, %v319
    %v328 = vadd.f32 %v232, %v324
    %v329 = vld [vmem:[%s2] sm:$0x1]
    %v331 = vlaneseq
    %v332 = vshrl.u32 %v331, 7
    %v333 = vsub.s32 0, %v332
    %v334 = vrot.slane %v329, %v333
    %v336 = vadd.f32 %v327, %v334
    %v337 = vadd.f32 %v328, %v334
    %v338 = vmax.f32 %v336, 0.0
    %v339 = vmax.f32 %v337, 0.0
    %v342 = vrot.slane %v338, 7
    %v343 = vrot.slane %v339, 7
    %v344 = vsel %vm38, %v342, %v343
    %v347 = vsel %vm38, 0.0, %v342
    %v348 = vrot.slane %v338, 1
    %v349 = vrot.slane %v339, 1
    %v350 = vsel %vm45, %v348, %v349
    %v353 = vsel %vm45, %v349, 0.0
    %v354 = vld [vmem:[#allocation2] sm:$0xff]
    %v355 = vld [vmem:[#allocation2 + $0x8] sm:$0xff]
    %v356 = vld [vmem:[#allocation2 + $0x10] sm:$0xff]
    %v357 = vld [vmem:[#allocation2 + $0x18] sm:$0xff]
    %v358 = vld [vmem:[#allocation2 + $0x20] sm:$0xff]
    %v359 = vld [vmem:[#allocation2 + $0x28] sm:$0xff]
    %v360 = vld [vmem:[#allocation2 + $0x30] sm:$0xff]
    %v361 = vld [vmem:[#allocation2 + $0x38] sm:$0xff]
    %v362 = vld [vmem:[#allocation2 + $0x40] sm:$0xff]
    %v363 = vld [vmem:[#allocation2 + $0x48] sm:$0xff]
    %v364 = vld [vmem:[#allocation2 + $0x50] sm:$0xff]
    %v365 = vld [vmem:[#allocation2 + $0x58] sm:$0xff]
    %v366 = vld [vmem:[#allocation2 + $0x60] sm:$0xff]
    %v367 = vld [vmem:[#allocation2 + $0x68] sm:$0xff]
    %v368 = vld [vmem:[#allocation2 + $0x70] sm:$0xff]
    %v369 = vld [vmem:[#allocation2 + $0x78] sm:$0xff]
    %s370 = scalar_lea.vmem [#allocation2], 128
    %v371 = vld [vmem:[%s370] sm:$0xff]
    %v372 = vld [vmem:[%s370 + $0x8] sm:$0xff]
    %v373 = vld [vmem:[%s370 + $0x10] sm:$0xff]
    %v374 = vld [vmem:[%s370 + $0x18] sm:$0xff]
    %v375 = vld [vmem:[%s370 + $0x20] sm:$0xff]
    %v376 = vld [vmem:[%s370 + $0x28] sm:$0xff]
    %v377 = vld [vmem:[%s370 + $0x30] sm:$0xff]
    %v378 = vld [vmem:[%s370 + $0x38] sm:$0xff]
    %v379 = vld [vmem:[%s370 + $0x40] sm:$0xff]
    %v380 = vld [vmem:[%s370 + $0x48] sm:$0xff]
    %v381 = vld [vmem:[%s370 + $0x50] sm:$0xff]
    %v382 = vld [vmem:[%s370 + $0x58] sm:$0xff]
    %v383 = vld [vmem:[%s370 + $0x60] sm:$0xff]
    %v384 = vld [vmem:[%s370 + $0x68] sm:$0xff]
    %v385 = vld [vmem:[%s370 + $0x70] sm:$0xff]
    %v386 = vld [vmem:[%s370 + $0x78] sm:$0xff]
    %387 = vmatprep.subr.mxu0 0.0
    %388 = vmatpush1.msra.mxu0 %v371
    %389 = vmatprep.subr.mxu0 0.0
    %390 = vmatpush1.msra.mxu0 %v372
    %391 = vmatprep.subr.mxu0 0.0
    %392 = vmatpush1.msra.mxu0 %v373
    %393 = vmatprep.subr.mxu0 0.0
    %394 = vmatpush1.msra.mxu0 %v374
    %395 = vmatprep.subr.mxu0 0.0
    %396 = vmatpush1.msra.mxu0 %v375
    %397 = vmatprep.subr.mxu0 0.0
    %398 = vmatpush1.msra.mxu0 %v376
    %399 = vmatprep.subr.mxu0 0.0
    %400 = vmatpush1.msra.mxu0 %v377
    %401 = vmatprep.subr.mxu0 0.0
    %402 = vmatpush1.msra.mxu0 %v378
    %403 = vmatprep.subr.mxu0 0.0
    %404 = vmatpush1.msra.mxu0 %v379
    %405 = vmatprep.subr.mxu0 0.0
    %406 = vmatpush1.msra.mxu0 %v380
    %407 = vmatprep.subr.mxu0 0.0
    %408 = vmatpush1.msra.mxu0 %v381
    %409 = vmatprep.subr.mxu0 0.0
    %410 = vmatpush1.msra.mxu0 %v382
    %411 = vmatprep.subr.mxu0 0.0
    %412 = vmatpush1.msra.mxu0 %v383
    %413 = vmatprep.subr.mxu0 0.0
    %414 = vmatpush1.msra.mxu0 %v384
    %415 = vmatprep.subr.mxu0 0.0
    %416 = vmatpush1.msra.mxu0 %v385
    %417 = vmatprep.subr.mxu0 0.0
    %418 = vmatpush1.msra.mxu0 %v386
    %419 = vmatprep.subr.mxu0 0.0
    %420 = vmatpush1.msra.mxu0 0.0
    %421 = vmatprep.subr.mxu0 0.0
    %422 = vmatpush1.msra.mxu0 0.0
    %423 = vmatprep.subr.mxu0 0.0
    %424 = vmatpush1.msra.mxu0 0.0
    %425 = vmatprep.subr.mxu0 0.0
    %426 = vmatpush1.msra.mxu0 0.0
    %427 = vmatprep.subr.mxu0 0.0
    %428 = vmatpush1.msra.mxu0 0.0
    %429 = vmatprep.subr.mxu0 0.0
    %430 = vmatpush1.msra.mxu0 0.0
    %431 = vmatprep.subr.mxu0 0.0
    %432 = vmatpush1.msra.mxu0 0.0
    %433 = vmatprep.subr.mxu0 0.0
    %434 = vmatpush1.msra.mxu0 0.0
    %435 = vmatprep.subr.mxu0 0.0
    %436 = vmatpush1.msra.mxu0 0.0
    %437 = vmatprep.subr.mxu0 0.0
    %438 = vmatpush1.msra.mxu0 0.0
    %439 = vmatprep.subr.mxu0 0.0
    %440 = vmatpush1.msra.mxu0 0.0
    %441 = vmatprep.subr.mxu0 0.0
    %442 = vmatpush1.msra.mxu0 0.0
    %443 = vmatprep.subr.mxu0 0.0
    %444 = vmatpush1.msra.mxu0 0.0
    %445 = vmatprep.subr.mxu0 0.0
    %446 = vmatpush1.msra.mxu0 0.0
    %447 = vmatprep.subr.mxu0 0.0
    %448 = vmatpush1.msra.mxu0 0.0
    %449 = vmatprep.subr.mxu0 0.0
    %450 = vmatpush1.msra.mxu0 0.0
    %451 = vmatprep.mubr.f32.mxu0 0.0
    %452 = vmatmul.mubr.f32.gmra.mrb[0].mxu0 %v338
    %v453 = vpop.f32.mrb[0].mxu0
    %v454 = vadd.f32 0.0, %v453
    %v455 = vpop.f32.mrb[0].mxu0
    %456 = vmatprep.mubr.f32.mxu0 0.0
    %457 = vmatmul.mubr.f32.gmra.mrb[0].mxu0 %v339
    %v458 = vpop.f32.mrb[0].mxu0
    %v459 = vadd.f32 0.0, %v458
    %v460 = vpop.f32.mrb[0].mxu0
    %461 = vdwg.mxu0
    %462 = vmatprep.subr.mxu0 0.0
    %463 = vmatpush1.msra.mxu0 %v354
    %464 = vmatprep.subr.mxu0 0.0
    %465 = vmatpush1.msra.mxu0 %v355
    %466 = vmatprep.subr.mxu0 0.0
    %467 = vmatpush1.msra.mxu0 %v356
    %468 = vmatprep.subr.mxu0 0.0
    %469 = vmatpush1.msra.mxu0 %v357
    %470 = vmatprep.subr.mxu0 0.0
    %471 = vmatpush1.msra.mxu0 %v358
    %472 = vmatprep.subr.mxu0 0.0
    %473 = vmatpush1.msra.mxu0 %v359
    %474 = vmatprep.subr.mxu0 0.0
    %475 = vmatpush1.msra.mxu0 %v360
    %476 = vmatprep.subr.mxu0 0.0
    %477 = vmatpush1.msra.mxu0 %v361
    %478 = vmatprep.subr.mxu0 0.0
    %479 = vmatpush1.msra.mxu0 %v362
    %480 = vmatprep.subr.mxu0 0.0
    %481 = vmatpush1.msra.mxu0 %v363
    %482 = vmatprep.subr.mxu0 0.0
    %483 = vmatpush1.msra.mxu0 %v364
    %484 = vmatprep.subr.mxu0 0.0
    %485 = vmatpush1.msra.mxu0 %v365
    %486 = vmatprep.subr.mxu0 0.0
    %487 = vmatpush1.msra.mxu0 %v366
    %488 = vmatprep.subr.mxu0 0.0
    %489 = vmatpush1.msra.mxu0 %v367
    %490 = vmatprep.subr.mxu0 0.0
    %491 = vmatpush1.msra.mxu0 %v368
    %492 = vmatprep.subr.mxu0 0.0
    %493 = vmatpush1.msra.mxu0 %v369
    %494 = vmatprep.subr.mxu0 0.0
    %495 = vmatpush1.msra.mxu0 0.0
    %496 = vmatprep.subr.mxu0 0.0
    %497 = vmatpush1.msra.mxu0 0.0
    %498 = vmatprep.subr.mxu0 0.0
    %499 = vmatpush1.msra.mxu0 0.0
    %500 = vmatprep.subr.mxu0 0.0
    %501 = vmatpush1.msra.mxu0 0.0
    %502 = vmatprep.subr.mxu0 0.0
    %503 = vmatpush1.msra.mxu0 0.0
    %504 = vmatprep.subr.mxu0 0.0
    %505 = vmatpush1.msra.mxu0 0.0
    %506 = vmatprep.subr.mxu0 0.0
    %507 = vmatpush1.msra.mxu0 0.0
    %508 = vmatprep.subr.mxu0 0.0
    %509 = vmatpush1.msra.mxu0 0.0
    %510 = vmatprep.subr.mxu0 0.0
    %511 = vmatpush1.msra.mxu0 0.0
    %512 = vmatprep.subr.mxu0 0.0
    %513 = vmatpush1.msra.mxu0 0.0
    %514 = vmatprep.subr.mxu0 0.0
    %515 = vmatpush1.msra.mxu0 0.0
    %516 = vmatprep.subr.mxu0 0.0
    %517 = vmatpush1.msra.mxu0 0.0
    %518 = vmatprep.subr.mxu0 0.0
    %519 = vmatpush1.msra.mxu0 0.0
    %520 = vmatprep.subr.mxu0 0.0
    %521 = vmatpush1.msra.mxu0 0.0
    %522 = vmatprep.subr.mxu0 0.0
    %523 = vmatpush1.msra.mxu0 0.0
    %524 = vmatprep.subr.mxu0 0.0
    %525 = vmatpush1.msra.mxu0 0.0
    %526 = vmatprep.mubr.f32.mxu0 0.0
    %527 = vmatmul.mubr.f32.gmra.mrb[0].mxu0 %v347
    %v528 = vpop.f32.mrb[0].mxu0
    %v529 = vadd.f32 %v454, %v528
    %v530 = vpop.f32.mrb[0].mxu0
    %531 = vmatprep.mubr.f32.mxu0 0.0
    %532 = vmatmul.mubr.f32.gmra.mrb[0].mxu0 %v344
    %v533 = vpop.f32.mrb[0].mxu0
    %v534 = vadd.f32 %v459, %v533
    %v535 = vpop.f32.mrb[0].mxu0
    %536 = vdwg.mxu0
    %s537 = scalar_lea.vmem [#allocation2], 256
    %v538 = vld [vmem:[%s537] sm:$0xff]
    %v539 = vld [vmem:[%s537 + $0x8] sm:$0xff]
    %v540 = vld [vmem:[%s537 + $0x10] sm:$0xff]
    %v541 = vld [vmem:[%s537 + $0x18] sm:$0xff]
    %v542 = vld [vmem:[%s537 + $0x20] sm:$0xff]
    %v543 = vld [vmem:[%s537 + $0x28] sm:$0xff]
    %v544 = vld [vmem:[%s537 + $0x30] sm:$0xff]
    %v545 = vld [vmem:[%s537 + $0x38] sm:$0xff]
    %v546 = vld [vmem:[%s537 + $0x40] sm:$0xff]
    %v547 = vld [vmem:[%s537 + $0x48] sm:$0xff]
    %v548 = vld [vmem:[%s537 + $0x50] sm:$0xff]
    %v549 = vld [vmem:[%s537 + $0x58] sm:$0xff]
    %v550 = vld [vmem:[%s537 + $0x60] sm:$0xff]
    %v551 = vld [vmem:[%s537 + $0x68] sm:$0xff]
    %v552 = vld [vmem:[%s537 + $0x70] sm:$0xff]
    %v553 = vld [vmem:[%s537 + $0x78] sm:$0xff]
    %554 = vmatprep.subr.mxu0 0.0
    %555 = vmatpush1.msra.mxu0 %v538
    %556 = vmatprep.subr.mxu0 0.0
    %557 = vmatpush1.msra.mxu0 %v539
    %558 = vmatprep.subr.mxu0 0.0
    %559 = vmatpush1.msra.mxu0 %v540
    %560 = vmatprep.subr.mxu0 0.0
    %561 = vmatpush1.msra.mxu0 %v541
    %562 = vmatprep.subr.mxu0 0.0
    %563 = vmatpush1.msra.mxu0 %v542
    %564 = vmatprep.subr.mxu0 0.0
    %565 = vmatpush1.msra.mxu0 %v543
    %566 = vmatprep.subr.mxu0 0.0
    %567 = vmatpush1.msra.mxu0 %v544
    %568 = vmatprep.subr.mxu0 0.0
    %569 = vmatpush1.msra.mxu0 %v545
    %570 = vmatprep.subr.mxu0 0.0
    %571 = vmatpush1.msra.mxu0 %v546
    %572 = vmatprep.subr.mxu0 0.0
    %573 = vmatpush1.msra.mxu0 %v547
    %574 = vmatprep.subr.mxu0 0.0
    %575 = vmatpush1.msra.mxu0 %v548
    %576 = vmatprep.subr.mxu0 0.0
    %577 = vmatpush1.msra.mxu0 %v549
    %578 = vmatprep.subr.mxu0 0.0
    %579 = vmatpush1.msra.mxu0 %v550
    %580 = vmatprep.subr.mxu0 0.0
    %581 = vmatpush1.msra.mxu0 %v551
    %582 = vmatprep.subr.mxu0 0.0
    %583 = vmatpush1.msra.mxu0 %v552
    %584 = vmatprep.subr.mxu0 0.0
    %585 = vmatpush1.msra.mxu0 %v553
    %586 = vmatprep.subr.mxu0 0.0
    %587 = vmatpush1.msra.mxu0 0.0
    %588 = vmatprep.subr.mxu0 0.0
    %589 = vmatpush1.msra.mxu0 0.0
    %590 = vmatprep.subr.mxu0 0.0
    %591 = vmatpush1.msra.mxu0 0.0
    %592 = vmatprep.subr.mxu0 0.0
    %593 = vmatpush1.msra.mxu0 0.0
    %594 = vmatprep.subr.mxu0 0.0
    %595 = vmatpush1.msra.mxu0 0.0
    %596 = vmatprep.subr.mxu0 0.0
    %597 = vmatpush1.msra.mxu0 0.0
    %598 = vmatprep.subr.mxu0 0.0
    %599 = vmatpush1.msra.mxu0 0.0
    %600 = vmatprep.subr.mxu0 0.0
    %601 = vmatpush1.msra.mxu0 0.0
    %602 = vmatprep.subr.mxu0 0.0
    %603 = vmatpush1.msra.mxu0 0.0
    %604 = vmatprep.subr.mxu0 0.0
    %605 = vmatpush1.msra.mxu0 0.0
    %606 = vmatprep.subr.mxu0 0.0
    %607 = vmatpush1.msra.mxu0 0.0
    %608 = vmatprep.subr.mxu0 0.0
    %609 = vmatpush1.msra.mxu0 0.0
    %610 = vmatprep.subr.mxu0 0.0
    %611 = vmatpush1.msra.mxu0 0.0
    %612 = vmatprep.subr.mxu0 0.0
    %613 = vmatpush1.msra.mxu0 0.0
    %614 = vmatprep.subr.mxu0 0.0
    %615 = vmatpush1.msra.mxu0 0.0
    %616 = vmatprep.subr.mxu0 0.0
    %617 = vmatpush1.msra.mxu0 0.0
    %618 = vmatprep.mubr.f32.mxu0 0.0
    %619 = vmatmul.mubr.f32.gmra.mrb[0].mxu0 %v350
    %v620 = vpop.f32.mrb[0].mxu0
    %v621 = vadd.f32 0.0, %v620
    %v622 = vpop.f32.mrb[0].mxu0
    %623 = vmatprep.mubr.f32.mxu0 0.0
    %624 = vmatmul.mubr.f32.gmra.mrb[0].mxu0 %v353
    %v625 = vpop.f32.mrb[0].mxu0
    %v626 = vadd.f32 0.0, %v625
    %v627 = vpop.f32.mrb[0].mxu0
    %628 = vdwg.mxu0
    %v629 = vadd.f32 %v529, %v621
    %v630 = vadd.f32 %v534, %v626
    %v631 = vld [vmem:[%s4] sm:$0x1]
    %v633 = vlaneseq
    %v634 = vshrl.u32 %v633, 7
    %v635 = vsub.s32 0, %v634
    %v636 = vrot.slane %v631, %v635
    %v638 = vadd.f32 %v629, %v636
    %v639 = vadd.f32 %v630, %v636
    %v640 = vadd.f32 %v638, %v34
    %v641 = vadd.f32 %v639, %v35
    %v642 = vmax.f32 %v640, 0.0
    %v643 = vmax.f32 %v641, 0.0
    %644 = vst [vmem:[%s5] sm:$0xff] %v642
    %645 = vst [vmem:[%s5 + $0x8] sm:$0xff] %v643
    // Predicated region
    $region26: #{basic_block_forward.1} parent=1 // pred_check
      _
    $region27: #{basic_block_forward.1} parent=1 // pred_check_branch
      %647 = sbr.rel (0) target = $region29
    $region28: #{basic_block_forward.1} parent=1 // pred_region
      _
    $region29: #{basic_block_forward.1} parent=1 // pred_fallthru
      _
    // Predicated region
    $region30: #{basic_block_forward.1} parent=1 // pred_check
      _
    $region31: #{basic_block_forward.1} parent=1 // pred_check_branch
      %649 = sbr.rel (0) target = $region33
    $region32: #{basic_block_forward.1} parent=1 // pred_region
      _
    $region33: #{basic_block_forward.1} parent=1 // pred_fallthru
      _
    %650 = vsyncpa [#allocation3], 1

</llo_original>
